<compile_context>
chip_gen: v5e
topology: v5e:2x2
jax: 0.10.0
libtpu: 0.0.40
codegen_flags: <defaults>
</compile_context>

<pallas_src>
import jax
import jax.numpy as jnp
from jax.experimental import pallas as pl
from jax.experimental.pallas import tpu as pltpu


def _round_up(n, m):
    return ((n + m - 1) // m) * m


def _ffn_kernel(x_ref, w1_ref, b1_ref, w2_ref, wid_ref, bout_ref, o_ref, acc_ref):
    k = pl.program_id(1)
    x = x_ref[...]

    # k == 0: initialise the accumulator with the identity branch plus the
    # fused output bias (b2 + b_identity).
    @pl.when(k == 0)
    def _init():
        ident = jnp.dot(x, wid_ref[...], preferred_element_type=jnp.float32)
        acc_ref[...] = ident + bout_ref[...].astype(jnp.float32)

    # Every k: one F-chunk of the feedforward branch (ReLU is elementwise, so
    # the F reduction tiles exactly).
    h = jnp.dot(x, w1_ref[...], preferred_element_type=jnp.float32)
    h = jnp.maximum(h + b1_ref[...].astype(jnp.float32), 0.0)
    acc_ref[...] += jnp.dot(h.astype(w2_ref.dtype), w2_ref[...],
                            preferred_element_type=jnp.float32)

    @pl.when(k == pl.num_programs(1) - 1)
    def _finalize():
        o_ref[...] = acc_ref[...].astype(o_ref.dtype)


def asymmetric_ffn(x, w1, b1, w2, b2, wid, bid, *, tile_m=256, tile_f=512):
    """x: (B, S, C_in). Weights are (in, out); biases are (out,)."""
    B, S, C_in = x.shape
    F = w1.shape[1]
    E = w2.shape[1]
    M = B * S

    # ---- tile sizes & zero padding so every block is (8,128)-aligned ----
    tile_m = min(_round_up(tile_m, 8), _round_up(M, 8))
    tile_f = min(_round_up(tile_f, 128), _round_up(F, 128))
    M_pad = _round_up(M, tile_m)          # handles M % tile_m remainder
    C_pad = _round_up(C_in, 128)
    F_pad = _round_up(F, tile_f)
    E_pad = _round_up(E, 128)             # lane-dense output stores

    x2 = jnp.pad(x.reshape(M, C_in), ((0, M_pad - M), (0, C_pad - C_in)))
    w1p = jnp.pad(w1, ((0, C_pad - C_in), (0, F_pad - F)))
    b1p = jnp.pad(b1, (0, F_pad - F)).reshape(1, F_pad)
    w2p = jnp.pad(w2, ((0, F_pad - F), (0, E_pad - E)))
    widp = jnp.pad(wid, ((0, C_pad - C_in), (0, E_pad - E)))
    boutp = jnp.pad(b2 + bid, (0, E_pad - E)).reshape(1, E_pad)   # fused output bias

    grid = (M_pad // tile_m, F_pad // tile_f)

    # ---- advisory cost estimate + VMEM budget ----
    flops = 2 * M_pad * (C_pad * F_pad + F_pad * E_pad + C_pad * E_pad)
    bytes_accessed = sum(int(a.size) * a.dtype.itemsize
                         for a in (x2, w1p, b1p, w2p, widp, boutp))
    bytes_accessed += M_pad * E_pad * x.dtype.itemsize
    xb = x.dtype.itemsize
    wb = w1.dtype.itemsize
    resident = 2 * (tile_m * C_pad * xb + C_pad * tile_f * wb + tile_f * wb
                    + tile_f * E_pad * wb + C_pad * E_pad * wb + E_pad * wb
                    + tile_m * E_pad * xb) + tile_m * E_pad * 4
    vmem_limit = int(min(max(resident * 3 // 2, 32 * 1024 * 1024),
                         64 * 1024 * 1024))

    # TODO(synk): single-buffer the constant-index weight/bias specs
    # (pipeline_mode=pl.Buffered(1)) to halve resident weight VMEM once that
    # path is stable in the target jax version.
    out2 = pl.pallas_call(
        _ffn_kernel,
        out_shape=jax.ShapeDtypeStruct((M_pad, E_pad), x.dtype),
        grid_spec=pltpu.PrefetchScalarGridSpec(
            num_scalar_prefetch=0,
            grid=grid,
            in_specs=[
                pl.BlockSpec((tile_m, C_pad), lambda i, k: (i, 0)),   # x row tile
                pl.BlockSpec((C_pad, tile_f), lambda i, k: (0, k)),   # W1 F-chunk
                pl.BlockSpec((1, tile_f), lambda i, k: (0, k)),       # b1 F-chunk
                pl.BlockSpec((tile_f, E_pad), lambda i, k: (k, 0)),   # W2 F-chunk
                pl.BlockSpec((C_pad, E_pad), lambda i, k: (0, 0)),    # W_identity
                pl.BlockSpec((1, E_pad), lambda i, k: (0, 0)),        # b2 + b_identity
            ],
            out_specs=pl.BlockSpec((tile_m, E_pad), lambda i, k: (i, 0)),
            scratch_shapes=[pltpu.VMEM((tile_m, E_pad), jnp.float32)],
        ),
        compiler_params=pltpu.CompilerParams(
            dimension_semantics=("parallel", "arbitrary"),
            vmem_limit_bytes=vmem_limit,
        ),
        cost_estimate=pl.CostEstimate(
            flops=flops, transcendentals=0, bytes_accessed=bytes_accessed),
    )(x2, w1p, b1p, w2p, widp, boutp)

    return out2[:M, :E].reshape(B, S, E)


def _xavier_normal(key, fan_in, fan_out, dtype=jnp.float32):
    std = (2.0 / (fan_in + fan_out)) ** 0.5
    # returned as (in, out) so the kernel can do x @ W directly
    return std * jax.random.normal(key, (fan_in, fan_out), dtype=dtype)


if __name__ == "__main__":
    # Small config consistent with the module: feedforward_channels != embed_dims,
    # so identity_fc is a Linear.  M = B*S = 14 exercises the M-remainder padding.
    B, S = 2, 7
    IN_CH = 64
    EMBED = 48
    FFW = 256

    key = jax.random.PRNGKey(0)
    k_x, k_w1, k_w2, k_wid = jax.random.split(key, 4)

    x = jax.random.normal(k_x, (B, S, IN_CH), dtype=jnp.float32)

    # Deterministic parameter init (xavier-normal weights, zero biases,
    # matching init_weights()).
    w1 = _xavier_normal(k_w1, IN_CH, FFW)      # Linear(in_channels, feedforward_channels)
    b1 = jnp.zeros((FFW,), jnp.float32)
    w2 = _xavier_normal(k_w2, FFW, EMBED)      # Linear(feedforward_channels, embed_dims)
    b2 = jnp.zeros((EMBED,), jnp.float32)
    wid = _xavier_normal(k_wid, IN_CH, EMBED)  # identity_fc: Linear(in_channels, embed_dims)
    bid = jnp.zeros((EMBED,), jnp.float32)

    # Pure-JAX reference.
    h_ref = jnp.maximum(x @ w1 + b1, 0.0)
    ref = h_ref @ w2 + b2 + (x @ wid + bid)

    # Path 1: single F step (F_pad == tile_f).
    out_a = asymmetric_ffn(x, w1, b1, w2, b2, wid, bid)
    # Path 2: tiled F reduction (two k steps through the accumulator scratch).
    out_b = asymmetric_ffn(x, w1, b1, w2, b2, wid, bid, tile_f=128)
    out_a, out_b = jax.block_until_ready((out_a, out_b))

    assert out_a.shape == (B, S, EMBED)
    assert out_b.shape == (B, S, EMBED)
    assert jnp.allclose(out_a, ref, atol=5e-4, rtol=5e-4), "mismatch (single-k) vs reference"
    assert jnp.allclose(out_b, ref, atol=5e-4, rtol=5e-4), "mismatch (tiled-k) vs reference"

    # TODO(synk): dropout layers are identity in eval mode and thus omitted;
    # pre_norm/post_norm are None in the default config and not implemented.
    print("KERNEL_OK")
</pallas_src>

<mosaic_0001>
module attributes {stable_mosaic.version = 11 : i64} {
  func.func @_ffn_kernel(%arg0: i32, %arg1: i32, %arg2: memref<16x128xf32, #tpu.memory_space<vmem>>, %arg3: memref<128x256xf32, #tpu.memory_space<vmem>>, %arg4: memref<1x256xf32, #tpu.memory_space<vmem>>, %arg5: memref<256x128xf32, #tpu.memory_space<vmem>>, %arg6: memref<128x128xf32, #tpu.memory_space<vmem>>, %arg7: memref<1x128xf32, #tpu.memory_space<vmem>>, %arg8: memref<16x128xf32, #tpu.memory_space<vmem>>, %arg9: memref<16x128xf32, #tpu.memory_space<vmem>>) attributes {dimension_semantics = [#tpu.dimension_semantics<parallel>, #tpu.dimension_semantics<arbitrary>], iteration_bounds = array<i64: 1, 1>, scalar_prefetch = 0 : i64, scratch_operands = 1 : i64, tpu.core_type = #tpu.core_type<tc>, window_params = [{transform_indices = @transform_0, window_bounds = array<i64: 16, 128>}, {transform_indices = @transform_1, window_bounds = array<i64: 128, 256>}, {transform_indices = @transform_2, window_bounds = array<i64: 1, 256>}, {transform_indices = @transform_3, window_bounds = array<i64: 256, 128>}, {pipeline_mode = #tpu.pipeline_mode<synchronous>, transform_indices = @transform_4, window_bounds = array<i64: 128, 128>}, {pipeline_mode = #tpu.pipeline_mode<synchronous>, transform_indices = @transform_5, window_bounds = array<i64: 1, 128>}, {transform_indices = @transform_6, window_bounds = array<i64: 16, 128>}]} {
    %c0 = arith.constant 0 : index
    %c0_0 = arith.constant 0 : index
    %0 = vector.load %arg2[%c0, %c0_0] : memref<16x128xf32, #tpu.memory_space<vmem>>, vector<16x128xf32>
    %c0_i32 = arith.constant 0 : i32
    %1 = arith.cmpi eq, %arg1, %c0_i32 : i32
    %2 = arith.extui %1 : i1 to i32
    %c0_i32_1 = arith.constant 0 : i32
    %3 = arith.cmpi ne, %2, %c0_i32_1 : i32
    scf.if %3 {
      %c0_16 = arith.constant 0 : index
      %c0_17 = arith.constant 0 : index
      %19 = vector.load %arg6[%c0_16, %c0_17] : memref<128x128xf32, #tpu.memory_space<vmem>>, vector<128x128xf32>
      %cst_18 = arith.constant dense<0.000000e+00> : vector<16x128xf32>
      %20 = tpu.matmul %0, %19, %cst_18 {dimension_numbers = #tpu.dot_dimension_numbers<[1], [0], [0], [1], [0, 0, 1, 1], [], []>} : vector<16x128xf32>, vector<128x128xf32>, vector<16x128xf32> -> vector<16x128xf32>
      %c0_19 = arith.constant 0 : index
      %c0_20 = arith.constant 0 : index
      %21 = vector.load %arg7[%c0_19, %c0_20] : memref<1x128xf32, #tpu.memory_space<vmem>>, vector<1x128xf32>
      %22 = vector.broadcast %21 : vector<1x128xf32> to vector<16x128xf32>
      %23 = arith.addf %20, %22 : vector<16x128xf32>
      %c0_21 = arith.constant 0 : index
      %c0_22 = arith.constant 0 : index
      %24 = vector.load %arg9[%c0_21, %c0_22] : memref<16x128xf32, #tpu.memory_space<vmem>>, vector<16x128xf32>
      tpu.vector_store %arg9[%c0_21, %c0_22], %23 {strides = array<i32>} : memref<16x128xf32, #tpu.memory_space<vmem>>, vector<16x128xf32>,
    } else {
    }
    %c0_2 = arith.constant 0 : index
    %c0_3 = arith.constant 0 : index
    %4 = vector.load %arg3[%c0_2, %c0_3] : memref<128x256xf32, #tpu.memory_space<vmem>>, vector<128x256xf32>
    %cst = arith.constant dense<0.000000e+00> : vector<16x256xf32>
    %5 = tpu.matmul %0, %4, %cst {dimension_numbers = #tpu.dot_dimension_numbers<[1], [0], [0], [1], [0, 0, 1, 1], [], []>} : vector<16x128xf32>, vector<128x256xf32>, vector<16x256xf32> -> vector<16x256xf32>
    %c0_4 = arith.constant 0 : index
    %c0_5 = arith.constant 0 : index
    %6 = vector.load %arg4[%c0_4, %c0_5] : memref<1x256xf32, #tpu.memory_space<vmem>>, vector<1x256xf32>
    %7 = vector.broadcast %6 : vector<1x256xf32> to vector<16x256xf32>
    %8 = arith.addf %5, %7 : vector<16x256xf32>
    %cst_6 = arith.constant 0.000000e+00 : f32
    %9 = vector.broadcast %cst_6 : f32 to vector<16x256xf32>
    %10 = arith.maximumf %8, %9 : vector<16x256xf32>
    %c0_7 = arith.constant 0 : index
    %c0_8 = arith.constant 0 : index
    %11 = vector.load %arg9[%c0_7, %c0_8] : memref<16x128xf32, #tpu.memory_space<vmem>>, vector<16x128xf32>
    %c0_9 = arith.constant 0 : index
    %c0_10 = arith.constant 0 : index
    %12 = vector.load %arg5[%c0_9, %c0_10] : memref<256x128xf32, #tpu.memory_space<vmem>>, vector<256x128xf32>
    %cst_11 = arith.constant dense<0.000000e+00> : vector<16x128xf32>
    %13 = tpu.matmul %10, %12, %cst_11 {dimension_numbers = #tpu.dot_dimension_numbers<[1], [0], [0], [1], [0, 0, 1, 1], [], []>} : vector<16x256xf32>, vector<256x128xf32>, vector<16x128xf32> -> vector<16x128xf32>
    %14 = arith.addf %11, %13 : vector<16x128xf32>
    %c0_12 = arith.constant 0 : index
    %c0_13 = arith.constant 0 : index
    %15 = vector.load %arg9[%c0_12, %c0_13] : memref<16x128xf32, #tpu.memory_space<vmem>>, vector<16x128xf32>
    tpu.vector_store %arg9[%c0_12, %c0_13], %14 {strides = array<i32>} : memref<16x128xf32, #tpu.memory_space<vmem>>, vector<16x128xf32>,
    %c0_i32_14 = arith.constant 0 : i32
    %16 = arith.cmpi eq, %arg1, %c0_i32_14 : i32
    %17 = arith.extui %16 : i1 to i32
    %c0_i32_15 = arith.constant 0 : i32
    %18 = arith.cmpi ne, %17, %c0_i32_15 : i32
    scf.if %18 {
      %c0_16 = arith.constant 0 : index
      %c0_17 = arith.constant 0 : index
      %19 = vector.load %arg9[%c0_16, %c0_17] : memref<16x128xf32, #tpu.memory_space<vmem>>, vector<16x128xf32>
      %c0_18 = arith.constant 0 : index
      %c0_19 = arith.constant 0 : index
      %20 = vector.load %arg8[%c0_18, %c0_19] : memref<16x128xf32, #tpu.memory_space<vmem>>, vector<16x128xf32>
      tpu.vector_store %arg8[%c0_18, %c0_19], %19 {strides = array<i32>} : memref<16x128xf32, #tpu.memory_space<vmem>>, vector<16x128xf32>,
    } else {
    }
    return
  }
  func.func @transform_0(%arg0: i32, %arg1: i32) -> (i32, i32) {
    %c0_i32 = arith.constant 0 : i32
    %c0_i32_0 = arith.constant 0 : i32
    return %arg0, %c0_i32 : i32, i32
  }
  func.func @transform_1(%arg0: i32, %arg1: i32) -> (i32, i32) {
    %c0_i32 = arith.constant 0 : i32
    %c0_i32_0 = arith.constant 0 : i32
    return %c0_i32, %arg1 : i32, i32
  }
  func.func @transform_2(%arg0: i32, %arg1: i32) -> (i32, i32) {
    %c0_i32 = arith.constant 0 : i32
    %c0_i32_0 = arith.constant 0 : i32
    return %c0_i32, %arg1 : i32, i32
  }
  func.func @transform_3(%arg0: i32, %arg1: i32) -> (i32, i32) {
    %c0_i32 = arith.constant 0 : i32
    %c0_i32_0 = arith.constant 0 : i32
    return %arg1, %c0_i32 : i32, i32
  }
  func.func @transform_4(%arg0: i32, %arg1: i32) -> (i32, i32) {
    %c0_i32 = arith.constant 0 : i32
    %c0_i32_0 = arith.constant 0 : i32
    %c0_i32_1 = arith.constant 0 : i32
    return %c0_i32, %c0_i32_0 : i32, i32
  }
  func.func @transform_5(%arg0: i32, %arg1: i32) -> (i32, i32) {
    %c0_i32 = arith.constant 0 : i32
    %c0_i32_0 = arith.constant 0 : i32
    %c0_i32_1 = arith.constant 0 : i32
    return %c0_i32, %c0_i32_0 : i32, i32
  }
  func.func @transform_6(%arg0: i32, %arg1: i32) -> (i32, i32) {
    %c0_i32 = arith.constant 0 : i32
    %c0_i32_0 = arith.constant 0 : i32
    return %arg0, %c0_i32 : i32, i32
  }
}

</mosaic_0001>

<llo_original>
// kernel: tpu_custom_call.1
$region0: #{tpu_custom_call.1}
  #allocation0 [shape = 'u32[]', space=smem, size = 0x4, offset = 0x4, fixed_abs, tag = 'smem constant byte address 0x4 - core index']
  #allocation1 [shape = 'u32[72,128]{1,0:T(1,128)}', space=vmem, size = 0x9000, scoped, tag = 'internal scratch']
  #allocation2 [shape = 'f32[16,128]{1,0:T(8,128)}', space=vmem, size = 0x2000, scoped, tag = 'scratch operand']
  %s0 = inlined_call_operand.hbm [shape: f32[16,128], index: 0, kind: input, shape index: {}]
  %s1 = inlined_call_operand.hbm [shape: f32[128,256], index: 1, kind: input, shape index: {}]
  %s2 = inlined_call_operand.hbm [shape: f32[1,256], index: 2, kind: input, shape index: {}]
  %s3 = inlined_call_operand.hbm [shape: f32[256,128], index: 3, kind: input, shape index: {}]
  %s4 = inlined_call_operand.hbm [shape: f32[128,128], index: 4, kind: input, shape index: {}]
  %s5 = inlined_call_operand.vmem [shape: f32[1,128], index: 5, kind: input, shape index: {}]
  %s6 = inlined_call_operand.hbm [shape: f32[16,128], index: 6, kind: output, shape index: {}]
  %s7 = sld [smem:[#allocation0]]
  $region62: #{tpu_custom_call.1} parent=0
    _
  %s9 = ssub.s32 1, %s7
  %s10 = scalar_select 0, %s9, %s7
  $region1: #{tpu_custom_call.1} parent=0
    #allocation3 [shape = 'u8[8192]{0}', space=vmem, size = 0x2000, scoped, tag = 'input window, operand 0, single buffered']
    #allocation4 [shape = 's32[1]{0}', space=sflag, size = 0x4, scoped, tag = 'scoped memory for tpu_custom_call.1']
    #allocation5 [shape = 's32[1]{0}', space=sflag, size = 0x4, scoped, tag = 'scoped memory for tpu_custom_call.1']
    #allocation6 [shape = 'u8[131072]{0}', space=vmem, size = 0x20000, scoped, tag = 'input window, operand 1, single buffered']
    #allocation7 [shape = 's32[1]{0}', space=sflag, size = 0x4, scoped, tag = 'scoped memory for tpu_custom_call.1']
    #allocation8 [shape = 'u8[1024]{0}', space=vmem, size = 0x400, scoped, tag = 'input window, operand 2, single buffered']
    #allocation9 [shape = 'u8[131072]{0}', space=vmem, size = 0x20000, scoped, tag = 'input window, operand 3, single buffered']
    #allocation10 [shape = 's32[1]{0}', space=sflag, size = 0x4, scoped, tag = 'scoped memory for tpu_custom_call.1']
    #allocation11 [shape = 'u8[65536]{0}', space=vmem, size = 0x10000, scoped, tag = 'input window, operand 4, single buffered']
    #allocation12 [shape = 'u8[8192]{0}', space=vmem, size = 0x2000, scoped, tag = 'output window, operand 0, single buffered']
    %11 = vsyncpa [#allocation4], 0
    %12 = vsyncpa [#allocation7], 0
    %13 = vsyncpa [#allocation10], 0
    %14 = vsyncpa [#allocation5], 0
    // Predicated region
    $region2: #{tpu_custom_call.1} parent=1 // pred_check
      _
    $region3: #{tpu_custom_call.1} parent=1 // pred_check_branch
      %16 = sbr.rel (0) target = $region5
    $region4: #{tpu_custom_call.1} parent=1 // pred_region
      %18 = vsyncadd [#allocation4], 0
      %s19 = sshll.u32 %s0, 4
      %s20 = int_to_ptr.hbm [resolvable:$true] %s19
      %s21 = sshll.u32 [#allocation3], 4
      %s22 = int_to_ptr.vmem [resolvable:$true] %s21
      %27 = dma.hbm_to_vmem [thread:$0]  %s20, 256, %s22, [#allocation4], 128, 128, 8
    $region5: #{tpu_custom_call.1} parent=1 // pred_fallthru
      _
    // Predicated region
    $region6: #{tpu_custom_call.1} parent=1 // pred_check
      _
    $region7: #{tpu_custom_call.1} parent=1 // pred_check_branch
      %29 = sbr.rel (0) target = $region9
    $region8: #{tpu_custom_call.1} parent=1 // pred_region
      %31 = vsyncadd [#allocation7], 0
      %s32 = sshll.u32 %s1, 4
      %s33 = int_to_ptr.hbm [resolvable:$true] %s32
      %s34 = sshll.u32 [#allocation6], 4
      %s35 = int_to_ptr.vmem [resolvable:$true] %s34
      %40 = dma.hbm_to_vmem [thread:$0]  %s33, 4096, %s35, [#allocation7], 256, 256, 16
    $region9: #{tpu_custom_call.1} parent=1 // pred_fallthru
      _
    // Predicated region
    $region10: #{tpu_custom_call.1} parent=1 // pred_check
      _
    $region11: #{tpu_custom_call.1} parent=1 // pred_check_branch
      %42 = sbr.rel (0) target = $region13
    $region12: #{tpu_custom_call.1} parent=1 // pred_region
      %44 = vsyncadd [#allocation7], 0
      %s46 = sshll.u32 %s2, 4
      %s47 = int_to_ptr.hbm [resolvable:$true] %s46
      %s48 = sshll.u32 [#allocation8], 4
      %s49 = int_to_ptr.vmem [resolvable:$true] %s48
      %51 = dma.hbm_to_vmem [thread:$0]  %s47, 32, %s49, [#allocation7]
    $region13: #{tpu_custom_call.1} parent=1 // pred_fallthru
      _
    // Predicated region
    $region14: #{tpu_custom_call.1} parent=1 // pred_check
      _
    $region15: #{tpu_custom_call.1} parent=1 // pred_check_branch
      %53 = sbr.rel (0) target = $region17
    $region16: #{tpu_custom_call.1} parent=1 // pred_region
      %55 = vsyncadd [#allocation10], 0
      %s56 = sshll.u32 %s3, 4
      %s57 = int_to_ptr.hbm [resolvable:$true] %s56
      %s58 = sshll.u32 [#allocation9], 4
      %s59 = int_to_ptr.vmem [resolvable:$true] %s58
      %64 = dma.hbm_to_vmem [thread:$0]  %s57, 4096, %s59, [#allocation10], 128, 128, 8
    $region17: #{tpu_custom_call.1} parent=1 // pred_fallthru
      _
    // Predicated region
    $region18: #{tpu_custom_call.1} parent=1 // pred_check
      _
    $region19: #{tpu_custom_call.1} parent=1 // pred_check_branch
      %66 = sbr.rel (0) target = $region21
    $region20: #{tpu_custom_call.1} parent=1 // pred_region
      %68 = vsyncadd [#allocation10], 0
      %s69 = sshll.u32 %s4, 4
      %s70 = int_to_ptr.hbm [resolvable:$true] %s69
      %s71 = sshll.u32 [#allocation11], 4
      %s72 = int_to_ptr.vmem [resolvable:$true] %s71
      %77 = dma.hbm_to_vmem [thread:$0]  %s70, 2048, %s72, [#allocation10], 128, 128, 8
    $region21: #{tpu_custom_call.1} parent=1 // pred_fallthru
      _
    // Predicated region
    $region22: #{tpu_custom_call.1} parent=1 // pred_check
      _
    $region23: #{tpu_custom_call.1} parent=1 // pred_check_branch
      %79 = sbr.rel (0) target = $region25
    $region24: #{tpu_custom_call.1} parent=1 // pred_region
      _
    $region25: #{tpu_custom_call.1} parent=1 // pred_fallthru
      _
    // Predicated region
    $region26: #{tpu_custom_call.1} parent=1 // pred_check
      _
    $region27: #{tpu_custom_call.1} parent=1 // pred_check_branch
      %81 = sbr.rel (0) target = $region29
    $region28: #{tpu_custom_call.1} parent=1 // pred_region
      %83 = dma.done [#allocation4], 256
    $region29: #{tpu_custom_call.1} parent=1 // pred_fallthru
      _
    // Predicated region
    $region30: #{tpu_custom_call.1} parent=1 // pred_check
      _
    $region31: #{tpu_custom_call.1} parent=1 // pred_check_branch
      %85 = sbr.rel (0) target = $region33
    $region32: #{tpu_custom_call.1} parent=1 // pred_region
      %87 = dma.done [#allocation7], 4096
    $region33: #{tpu_custom_call.1} parent=1 // pred_fallthru
      _
    // Predicated region
    $region34: #{tpu_custom_call.1} parent=1 // pred_check
      _
    $region35: #{tpu_custom_call.1} parent=1 // pred_check_branch
      %89 = sbr.rel (0) target = $region37
    $region36: #{tpu_custom_call.1} parent=1 // pred_region
      %91 = dma.done [#allocation7], 32
    $region37: #{tpu_custom_call.1} parent=1 // pred_fallthru
      _
    // Predicated region
    $region38: #{tpu_custom_call.1} parent=1 // pred_check
      _
    $region39: #{tpu_custom_call.1} parent=1 // pred_check_branch
      %93 = sbr.rel (0) target = $region41
    $region40: #{tpu_custom_call.1} parent=1 // pred_region
      %95 = dma.done [#allocation10], 4096
    $region41: #{tpu_custom_call.1} parent=1 // pred_fallthru
      _
    // Predicated region
    $region42: #{tpu_custom_call.1} parent=1 // pred_check
      _
    $region43: #{tpu_custom_call.1} parent=1 // pred_check_branch
      %97 = sbr.rel (0) target = $region45
    $region44: #{tpu_custom_call.1} parent=1 // pred_region
      %99 = dma.done [#allocation10], 2048
    $region45: #{tpu_custom_call.1} parent=1 // pred_fallthru
      _
    %v100 = vld [vmem:[#allocation3] sm:$0xff]
    %v101 = vld [vmem:[#allocation3 + $0x8] sm:$0xff]
    %p102 = scmp.eq.s32.totalorder 0, 0
    // Predicated region
    $region46: #{tpu_custom_call.1} parent=1 // pred_check
      %p103 = pneg %p102
    $region47: #{tpu_custom_call.1} parent=1 // pred_check_branch
      %105 = sbr.rel (%p103) target = $region49
    $region48: #{tpu_custom_call.1} parent=1 // pred_region
      %v106 = vld [vmem:[#allocation11] sm:$0xff]
      %v107 = vld [vmem:[#allocation11 + $0x8] sm:$0xff]
      %v108 = vld [vmem:[#allocation11 + $0x10] sm:$0xff]
      %v109 = vld [vmem:[#allocation11 + $0x18] sm:$0xff]
      %v110 = vld [vmem:[#allocation11 + $0x20] sm:$0xff]
      %v111 = vld [vmem:[#allocation11 + $0x28] sm:$0xff]
      %v112 = vld [vmem:[#allocation11 + $0x30] sm:$0xff]
      %v113 = vld [vmem:[#allocation11 + $0x38] sm:$0xff]
      %v114 = vld [vmem:[#allocation11 + $0x40] sm:$0xff]
      %v115 = vld [vmem:[#allocation11 + $0x48] sm:$0xff]
      %v116 = vld [vmem:[#allocation11 + $0x50] sm:$0xff]
      %v117 = vld [vmem:[#allocation11 + $0x58] sm:$0xff]
      %v118 = vld [vmem:[#allocation11 + $0x60] sm:$0xff]
      %v119 = vld [vmem:[#allocation11 + $0x68] sm:$0xff]
      %v120 = vld [vmem:[#allocation11 + $0x70] sm:$0xff]
      %v121 = vld [vmem:[#allocation11 + $0x78] sm:$0xff]
      %v122 = vld [vmem:[%s5] sm:$0x1]
      %v124 = vperm.slane %v122, 0
      %126 = vmatpush.msra.mxu0 %v121
      %127 = vmatpush.msra.mxu0 %v120
      %128 = vmatpush.msra.mxu0 %v119
      %129 = vmatpush.msra.mxu0 %v118
      %130 = vmatpush.msra.mxu0 %v117
      %131 = vmatpush.msra.mxu0 %v116
      %132 = vmatpush.msra.mxu0 %v115
      %133 = vmatpush.msra.mxu0 %v114
      %134 = vmatpush.msra.mxu0 %v113
      %135 = vmatpush.msra.mxu0 %v112
      %136 = vmatpush.msra.mxu0 %v111
      %137 = vmatpush.msra.mxu0 %v110
      %138 = vmatpush.msra.mxu0 %v109
      %139 = vmatpush.msra.mxu0 %v108
      %140 = vmatpush.msra.mxu0 %v107
      %141 = vmatpush.msra.mxu0 %v106
      %142 = vmatmul.f32.gmra.mxu0 %v100
      %v143 = vpop.f32.mrf.mxu0
      %v144 = vadd.f32 %v124, %v143
      %145 = vmatmul.f32.gmra.mxu0 %v101
      %v146 = vpop.f32.mrf.mxu0
      %v147 = vadd.f32 %v124, %v146
      %148 = vdwg.mxu0
      %149 = vst [vmem:[#allocation2] sm:$0xff] %v144
      %150 = vst [vmem:[#allocation2 + $0x8] sm:$0xff] %v147
    $region49: #{tpu_custom_call.1} parent=1 // pred_fallthru
      _
    %v151 = vld [vmem:[#allocation6] sm:$0xff]
    %v152 = vld [vmem:[#allocation6 + $0x8] sm:$0xff]
    %v153 = vld [vmem:[#allocation6 + $0x10] sm:$0xff]
    %v154 = vld [vmem:[#allocation6 + $0x18] sm:$0xff]
    %v155 = vld [vmem:[#allocation6 + $0x20] sm:$0xff]
    %v156 = vld [vmem:[#allocation6 + $0x28] sm:$0xff]
    %v157 = vld [vmem:[#allocation6 + $0x30] sm:$0xff]
    %v158 = vld [vmem:[#allocation6 + $0x38] sm:$0xff]
    %v159 = vld [vmem:[#allocation6 + $0x40] sm:$0xff]
    %v160 = vld [vmem:[#allocation6 + $0x48] sm:$0xff]
    %v161 = vld [vmem:[#allocation6 + $0x50] sm:$0xff]
    %v162 = vld [vmem:[#allocation6 + $0x58] sm:$0xff]
    %v163 = vld [vmem:[#allocation6 + $0x60] sm:$0xff]
    %v164 = vld [vmem:[#allocation6 + $0x68] sm:$0xff]
    %v165 = vld [vmem:[#allocation6 + $0x70] sm:$0xff]
    %v166 = vld [vmem:[#allocation6 + $0x78] sm:$0xff]
    %v167 = vld [vmem:[#allocation6 + $0x80] sm:$0xff]
    %v168 = vld [vmem:[#allocation6 + $0x88] sm:$0xff]
    %v169 = vld [vmem:[#allocation6 + $0x90] sm:$0xff]
    %v170 = vld [vmem:[#allocation6 + $0x98] sm:$0xff]
    %v171 = vld [vmem:[#allocation6 + $0xa0] sm:$0xff]
    %v172 = vld [vmem:[#allocation6 + $0xa8] sm:$0xff]
    %v173 = vld [vmem:[#allocation6 + $0xb0] sm:$0xff]
    %v174 = vld [vmem:[#allocation6 + $0xb8] sm:$0xff]
    %v175 = vld [vmem:[#allocation6 + $0xc0] sm:$0xff]
    %v176 = vld [vmem:[#allocation6 + $0xc8] sm:$0xff]
    %v177 = vld [vmem:[#allocation6 + $0xd0] sm:$0xff]
    %v178 = vld [vmem:[#allocation6 + $0xd8] sm:$0xff]
    %v179 = vld [vmem:[#allocation6 + $0xe0] sm:$0xff]
    %v180 = vld [vmem:[#allocation6 + $0xe8] sm:$0xff]
    %v181 = vld [vmem:[#allocation6 + $0xf0] sm:$0xff]
    %v182 = vld [vmem:[#allocation6 + $0xf8] sm:$0xff]
    %v183 = vld [vmem:[#allocation8] sm:$0x3]
    %v185 = vperm.slane %v183, 0
    %v186 = vperm.slane %v183, 1
    %189 = vmatpush.msra.mxu0 %v181
    %190 = vmatpush.msra.mxu0 %v179
    %191 = vmatpush.msra.mxu0 %v177
    %192 = vmatpush.msra.mxu0 %v175
    %193 = vmatpush.msra.mxu0 %v173
    %194 = vmatpush.msra.mxu0 %v171
    %195 = vmatpush.msra.mxu0 %v169
    %196 = vmatpush.msra.mxu0 %v167
    %197 = vmatpush.msra.mxu0 %v165
    %198 = vmatpush.msra.mxu0 %v163
    %199 = vmatpush.msra.mxu0 %v161
    %200 = vmatpush.msra.mxu0 %v159
    %201 = vmatpush.msra.mxu0 %v157
    %202 = vmatpush.msra.mxu0 %v155
    %203 = vmatpush.msra.mxu0 %v153
    %204 = vmatpush.msra.mxu0 %v151
    %205 = vmatmul.f32.gmra.mxu0 %v100
    %v206 = vpop.f32.mrf.mxu0
    %v207 = vadd.f32 %v185, %v206
    %208 = vmatmul.f32.gmra.mxu0 %v101
    %v209 = vpop.f32.mrf.mxu0
    %v210 = vadd.f32 %v185, %v209
    %211 = vdwg.mxu0
    %212 = vmatpush.msra.mxu0 %v182
    %213 = vmatpush.msra.mxu0 %v180
    %214 = vmatpush.msra.mxu0 %v178
    %215 = vmatpush.msra.mxu0 %v176
    %216 = vmatpush.msra.mxu0 %v174
    %217 = vmatpush.msra.mxu0 %v172
    %218 = vmatpush.msra.mxu0 %v170
    %219 = vmatpush.msra.mxu0 %v168
    %220 = vmatpush.msra.mxu0 %v166
    %221 = vmatpush.msra.mxu0 %v164
    %222 = vmatpush.msra.mxu0 %v162
    %223 = vmatpush.msra.mxu0 %v160
    %224 = vmatpush.msra.mxu0 %v158
    %225 = vmatpush.msra.mxu0 %v156
    %226 = vmatpush.msra.mxu0 %v154
    %227 = vmatpush.msra.mxu0 %v152
    %228 = vmatmul.f32.gmra.mxu0 %v100
    %v229 = vpop.f32.mrf.mxu0
    %v230 = vadd.f32 %v186, %v229
    %231 = vmatmul.f32.gmra.mxu0 %v101
    %v232 = vpop.f32.mrf.mxu0
    %v233 = vadd.f32 %v186, %v232
    %234 = vdwg.mxu0
    %v235 = vmax.f32 %v207, 0.0
    %v236 = vmax.f32 %v230, 0.0
    %v237 = vmax.f32 %v210, 0.0
    %v238 = vmax.f32 %v233, 0.0
    %v239 = vld [vmem:[#allocation2] sm:$0xff]
    %v240 = vld [vmem:[#allocation2 + $0x8] sm:$0xff]
    %v241 = vld [vmem:[#allocation9] sm:$0xff]
    %v242 = vld [vmem:[#allocation9 + $0x8] sm:$0xff]
    %v243 = vld [vmem:[#allocation9 + $0x10] sm:$0xff]
    %v244 = vld [vmem:[#allocation9 + $0x18] sm:$0xff]
    %v245 = vld [vmem:[#allocation9 + $0x20] sm:$0xff]
    %v246 = vld [vmem:[#allocation9 + $0x28] sm:$0xff]
    %v247 = vld [vmem:[#allocation9 + $0x30] sm:$0xff]
    %v248 = vld [vmem:[#allocation9 + $0x38] sm:$0xff]
    %v249 = vld [vmem:[#allocation9 + $0x40] sm:$0xff]
    %v250 = vld [vmem:[#allocation9 + $0x48] sm:$0xff]
    %v251 = vld [vmem:[#allocation9 + $0x50] sm:$0xff]
    %v252 = vld [vmem:[#allocation9 + $0x58] sm:$0xff]
    %v253 = vld [vmem:[#allocation9 + $0x60] sm:$0xff]
    %v254 = vld [vmem:[#allocation9 + $0x68] sm:$0xff]
    %v255 = vld [vmem:[#allocation9 + $0x70] sm:$0xff]
    %v256 = vld [vmem:[#allocation9 + $0x78] sm:$0xff]
    %v257 = vld [vmem:[#allocation9 + $0x80] sm:$0xff]
    %v258 = vld [vmem:[#allocation9 + $0x88] sm:$0xff]
    %v259 = vld [vmem:[#allocation9 + $0x90] sm:$0xff]
    %v260 = vld [vmem:[#allocation9 + $0x98] sm:$0xff]
    %v261 = vld [vmem:[#allocation9 + $0xa0] sm:$0xff]
    %v262 = vld [vmem:[#allocation9 + $0xa8] sm:$0xff]
    %v263 = vld [vmem:[#allocation9 + $0xb0] sm:$0xff]
    %v264 = vld [vmem:[#allocation9 + $0xb8] sm:$0xff]
    %v265 = vld [vmem:[#allocation9 + $0xc0] sm:$0xff]
    %v266 = vld [vmem:[#allocation9 + $0xc8] sm:$0xff]
    %v267 = vld [vmem:[#allocation9 + $0xd0] sm:$0xff]
    %v268 = vld [vmem:[#allocation9 + $0xd8] sm:$0xff]
    %v269 = vld [vmem:[#allocation9 + $0xe0] sm:$0xff]
    %v270 = vld [vmem:[#allocation9 + $0xe8] sm:$0xff]
    %v271 = vld [vmem:[#allocation9 + $0xf0] sm:$0xff]
    %v272 = vld [vmem:[#allocation9 + $0xf8] sm:$0xff]
    %273 = vmatpush.msra.mxu0 %v256
    %274 = vmatpush.msra.mxu0 %v255
    %275 = vmatpush.msra.mxu0 %v254
    %276 = vmatpush.msra.mxu0 %v253
    %277 = vmatpush.msra.mxu0 %v252
    %278 = vmatpush.msra.mxu0 %v251
    %279 = vmatpush.msra.mxu0 %v250
    %280 = vmatpush.msra.mxu0 %v249
    %281 = vmatpush.msra.mxu0 %v248
    %282 = vmatpush.msra.mxu0 %v247
    %283 = vmatpush.msra.mxu0 %v246
    %284 = vmatpush.msra.mxu0 %v245
    %285 = vmatpush.msra.mxu0 %v244
    %286 = vmatpush.msra.mxu0 %v243
    %287 = vmatpush.msra.mxu0 %v242
    %288 = vmatpush.msra.mxu0 %v241
    %289 = vmatmul.f32.gmra.mxu0 %v235
    %v290 = vpop.f32.mrf.mxu0
    %v291 = vadd.f32 0.0, %v290
    %292 = vmatmul.f32.gmra.mxu0 %v237
    %v293 = vpop.f32.mrf.mxu0
    %v294 = vadd.f32 0.0, %v293
    %295 = vdwg.mxu0
    %296 = vmatpush.msra.mxu0 %v272
    %297 = vmatpush.msra.mxu0 %v271
    %298 = vmatpush.msra.mxu0 %v270
    %299 = vmatpush.msra.mxu0 %v269
    %300 = vmatpush.msra.mxu0 %v268
    %301 = vmatpush.msra.mxu0 %v267
    %302 = vmatpush.msra.mxu0 %v266
    %303 = vmatpush.msra.mxu0 %v265
    %304 = vmatpush.msra.mxu0 %v264
    %305 = vmatpush.msra.mxu0 %v263
    %306 = vmatpush.msra.mxu0 %v262
    %307 = vmatpush.msra.mxu0 %v261
    %308 = vmatpush.msra.mxu0 %v260
    %309 = vmatpush.msra.mxu0 %v259
    %310 = vmatpush.msra.mxu0 %v258
    %311 = vmatpush.msra.mxu0 %v257
    %312 = vmatmul.f32.gmra.mxu0 %v236
    %v313 = vpop.f32.mrf.mxu0
    %v314 = vadd.f32 %v291, %v313
    %315 = vmatmul.f32.gmra.mxu0 %v238
    %v316 = vpop.f32.mrf.mxu0
    %v317 = vadd.f32 %v294, %v316
    %318 = vdwg.mxu0
    %v319 = vadd.f32 %v239, %v314
    %v320 = vadd.f32 %v240, %v317
    %321 = vst [vmem:[#allocation2] sm:$0xff] %v319
    %322 = vst [vmem:[#allocation2 + $0x8] sm:$0xff] %v320
    // Predicated region
    $region50: #{tpu_custom_call.1} parent=1 // pred_check
      %p323 = pneg %p102
    $region51: #{tpu_custom_call.1} parent=1 // pred_check_branch
      %325 = sbr.rel (%p323) target = $region53
    $region52: #{tpu_custom_call.1} parent=1 // pred_region
      %v326 = vld [vmem:[#allocation2] sm:$0xff]
      %v327 = vld [vmem:[#allocation2 + $0x8] sm:$0xff]
      %328 = vst [vmem:[#allocation12] sm:$0xff] %v326
      %329 = vst [vmem:[#allocation12 + $0x8] sm:$0xff] %v327
    $region53: #{tpu_custom_call.1} parent=1 // pred_fallthru
      _
    // Predicated region
    $region54: #{tpu_custom_call.1} parent=1 // pred_check
      _
    $region55: #{tpu_custom_call.1} parent=1 // pred_check_branch
      %331 = sbr.rel (0) target = $region57
    $region56: #{tpu_custom_call.1} parent=1 // pred_region
      %333 = vsyncadd [#allocation5], 0
      %s334 = sshll.u32 [#allocation12], 4
      %s335 = int_to_ptr.vmem [resolvable:$true] %s334
      %s336 = sshll.u32 %s6, 4
      %s337 = int_to_ptr.hbm [resolvable:$true] %s336
      %342 = dma.vmem_to_hbm [thread:$0]  %s335, 256, %s337, [#allocation5], 128, 128, 8
    $region57: #{tpu_custom_call.1} parent=1 // pred_fallthru
      _
    // Predicated region
    $region58: #{tpu_custom_call.1} parent=1 // pred_check
      _
    $region59: #{tpu_custom_call.1} parent=1 // pred_check_branch
      %344 = sbr.rel (0) target = $region61
    $region60: #{tpu_custom_call.1} parent=1 // pred_region
      %346 = dma.done [#allocation5], 256
    $region61: #{tpu_custom_call.1} parent=1 // pred_fallthru
      _
    %347 = vsyncpa [#allocation4], 1
    %348 = vsyncpa [#allocation7], 1
    %349 = vsyncpa [#allocation10], 1
    %350 = vsyncpa [#allocation5], 1

</llo_original>
